<compile_context>
chip_gen: v7x
topology: tpu7x:2x2x1
jax: 0.10.0
libtpu: 0.0.40
codegen_flags: <defaults>
</compile_context>

<pallas_src>
import math
import functools

import jax
import jax.numpy as jnp
from jax import lax
from jax.experimental import pallas as pl
from jax.experimental.pallas import tpu as pltpu


# Finite "minus infinity" for the causal mask / running max: keeps exp() NaN-free.
_MASK_VALUE = -1e30


@functools.lru_cache(maxsize=None)
def _vmem_limit_bytes():
    """Generation-aware scoped-VMEM limit: ~3/4 of physical VMEM, capped at 100 MiB
    (=> ~96 MiB on v5e/v6e, 48 MiB on v7x)."""
    try:
        cap = int(pltpu.get_tpu_info().vmem_capacity_bytes)
    except Exception:
        cap = 64 * 1024 * 1024  # conservative fallback (v7x physical VMEM)
    return min((cap // 4) * 3, 100 * 1024 * 1024)


def _compiler_params(dimension_semantics):
    return pltpu.CompilerParams(
        dimension_semantics=dimension_semantics,
        vmem_limit_bytes=_vmem_limit_bytes(),
    )


# ---------------------------------------------------------------------------
# Fused linear kernel: y = x @ W_t + b   (W_t is (K, N), bias broadcast over rows)
# K-tiled with an f32 VMEM accumulator.
# ---------------------------------------------------------------------------
def _linear_kernel(x_ref, w_ref, b_ref, o_ref, acc_ref):
    k = pl.program_id(2)

    @pl.when(k == 0)
    def _init():
        acc_ref[...] = jnp.zeros_like(acc_ref)

    acc_ref[...] += jnp.dot(x_ref[...], w_ref[...],
                            preferred_element_type=jnp.float32)

    @pl.when(k == pl.num_programs(2) - 1)
    def _store():
        o_ref[...] = (acc_ref[...] + b_ref[...]).astype(o_ref.dtype)


def _linear(x2d, w_t, b, *, block_m=512, block_n=512, block_k=1024):
    """y = x2d @ w_t + b.   x2d: (M, K); w_t: (K, N); b: (1, N) f32."""
    M, K = x2d.shape
    Kw, N = w_t.shape
    assert Kw == K and b.shape == (1, N)
    bm, bn, bk = min(block_m, M), min(block_n, N), min(block_k, K)
    # Grid: N-tile outermost, M-tile next, K-tile (reduction) innermost.  When K fits
    # a single block (common case) the (K, bn) weight tile's block index is constant
    # across the M-tile axis, so it stays VMEM-resident and only activations re-stream
    # from HBM; for very wide K the reduction axis bounds the tile footprint instead.
    grid = (pl.cdiv(N, bn), pl.cdiv(M, bm), pl.cdiv(K, bk))
    return pl.pallas_call(
        _linear_kernel,
        out_shape=jax.ShapeDtypeStruct((M, N), x2d.dtype),
        grid_spec=pltpu.PrefetchScalarGridSpec(
            num_scalar_prefetch=0,
            grid=grid,
            in_specs=[
                pl.BlockSpec((bm, bk), lambda j, i, k: (i, k)),   # activation tiles
                pl.BlockSpec((bk, bn), lambda j, i, k: (k, j)),   # weight tiles
                pl.BlockSpec((1, bn), lambda j, i, k: (0, j)),    # bias tiles
            ],
            out_specs=pl.BlockSpec((bm, bn), lambda j, i, k: (i, j)),
            scratch_shapes=[pltpu.VMEM((bm, bn), jnp.float32)],   # f32 accumulator
        ),
        compiler_params=_compiler_params(("parallel", "parallel", "arbitrary")),
    )(x2d, w_t, b)


# ---------------------------------------------------------------------------
# Flash-style causal attention. One grid step = (batch b, q tile qi, kv tile ki);
# q/k/v are sliced directly out of the fused (B, T, 3, H, hd) projection output
# (no HBM transposes); all heads are processed per step via batched einsums.
# ---------------------------------------------------------------------------
def _flash_attn_kernel(q_ref, k_ref, v_ref, o_ref, q_sc, m_sc, l_sc, acc_sc, *,
                       sm_scale, block_q, block_k, compute_dtype):
    """Block views (size-1 dims squeezed by the BlockSpecs):
         q_ref: (block_q, H, hd)   k_ref / v_ref: (block_k, H, hd)
         o_ref: (block_q, C) with C = H*hd  (lane-dense HBM writeback)
       Scratch:
         q_sc  : (H, block_q, hd) compute_dtype -- pre-scaled head-major q (once / q tile)
         m_sc / l_sc : (H, block_q, 1) f32      -- online-softmax running max / sum
         acc_sc: (H, block_q, hd) f32           -- output accumulator
    """
    qi = pl.program_id(1)
    ki = pl.program_id(2)
    # Last kv tile that intersects the causal triangle for this q tile.
    last_ki = ((qi + 1) * block_q - 1) // block_k

    @pl.when(ki == 0)
    def _init():
        m_sc[...] = jnp.full_like(m_sc, _MASK_VALUE)
        l_sc[...] = jnp.zeros_like(l_sc)
        acc_sc[...] = jnp.zeros_like(acc_sc)
        # Scale q once per tile (cheaper than scaling the (bq, bk) scores), move heads
        # to the leading (batch) dim once instead of per kv step, cast to MXU dtype.
        q = q_ref[...].astype(jnp.float32) * sm_scale          # (bq, H, hd)
        q_sc[...] = jnp.swapaxes(q, 0, 1).astype(compute_dtype)

    # kv tiles entirely above the diagonal do no work (their HBM DMA is also elided,
    # because the k/v index_map clamps the block index for those steps).
    @pl.when(ki <= last_ki)
    def _compute():
        q = q_sc[...]                                            # (H, bq, hd)
        k = jnp.swapaxes(k_ref[...], 0, 1).astype(compute_dtype) # (H, bk, hd)
        v = jnp.swapaxes(v_ref[...], 0, 1).astype(compute_dtype) # (H, bk, hd)

        s = jnp.einsum("hqd,hkd->hqk", q, k,
                       preferred_element_type=jnp.float32)       # (H, bq, bk) f32

        # Per-tile causal mask (only bites on diagonal tiles); finite fill value.
        row = qi * block_q + lax.broadcasted_iota(jnp.int32, (block_q, block_k), 0)
        col = ki * block_k + lax.broadcasted_iota(jnp.int32, (block_q, block_k), 1)
        s = jnp.where((col <= row)[None, :, :], s, _MASK_VALUE)

        # Online (flash) softmax update; all state stays f32.
        m_prev = m_sc[...]
        m_new = jnp.maximum(m_prev, s.max(axis=-1, keepdims=True))
        alpha = jnp.exp(m_prev - m_new)
        p = jnp.exp(s - m_new)
        l_sc[...] = alpha * l_sc[...] + p.sum(axis=-1, keepdims=True)
        acc_sc[...] = alpha * acc_sc[...] + jnp.einsum(
            "hqk,hkd->hqd", p.astype(compute_dtype), v,
            preferred_element_type=jnp.float32)
        m_sc[...] = m_new

    # Finalize on the last contributing kv tile (later skipped steps leave the resident
    # output block untouched).  approx reciprocal runs on the EUP slot.
    @pl.when(ki == last_ki)
    def _finalize():
        inv_l = pl.reciprocal(l_sc[...], approx=True)            # (H, bq, 1)
        out = acc_sc[...] * inv_l                                # (H, bq, hd) f32
        num_heads, _, head_dim = acc_sc.shape
        for h in range(num_heads):                               # static unroll over heads
            o_ref[:, h * head_dim:(h + 1) * head_dim] = out[h].astype(o_ref.dtype)


def _flash_attention(qkv, *, num_heads, sm_scale, block_q, block_k, compute_dtype):
    """qkv: (B, T, 3, H, hd) fused-projection output.  Returns (B, T, C), C = H*hd."""
    B, T, three, H, hd = qkv.shape
    assert three == 3 and H == num_heads
    C = H * hd
    assert T % block_q == 0 and T % block_k == 0, "T must be divisible by the tile sizes"
    grid = (B, T // block_q, T // block_k)

    def q_index(b, qi, ki):
        return (b, qi, 0, 0, 0)

    def kv_index(slot):
        def index(b, qi, ki):
            # Clamp kv tiles above the causal diagonal to the previous block index so
            # Pallas elides their HBM copy (compute for them is skipped by pl.when).
            last_ki = ((qi + 1) * block_q - 1) // block_k
            return (b, jnp.minimum(ki, last_ki), slot, 0, 0)
        return index

    kernel = functools.partial(
        _flash_attn_kernel, sm_scale=sm_scale, block_q=block_q, block_k=block_k,
        compute_dtype=compute_dtype)

    return pl.pallas_call(
        kernel,
        out_shape=jax.ShapeDtypeStruct((B, T, C), qkv.dtype),
        grid_spec=pltpu.PrefetchScalarGridSpec(
            num_scalar_prefetch=0,
            grid=grid,
            in_specs=[
                pl.BlockSpec((None, block_q, None, H, hd), q_index),       # q slot (0)
                pl.BlockSpec((None, block_k, None, H, hd), kv_index(1)),   # k slot
                pl.BlockSpec((None, block_k, None, H, hd), kv_index(2)),   # v slot
            ],
            out_specs=pl.BlockSpec((None, block_q, C), lambda b, qi, ki: (b, qi, 0)),
            scratch_shapes=[
                pltpu.VMEM((H, block_q, hd), compute_dtype),  # pre-scaled head-major q
                pltpu.VMEM((H, block_q, 1), jnp.float32),     # running max
                pltpu.VMEM((H, block_q, 1), jnp.float32),     # running sum
                pltpu.VMEM((H, block_q, hd), jnp.float32),    # output accumulator
            ],
        ),
        # batch / q-tile axes are parallel (sharded across TCs on v7x); the kv axis is
        # the online-softmax reduction -> arbitrary.
        compiler_params=_compiler_params(("parallel", "parallel", "arbitrary")),
    )(qkv, qkv, qkv)


# ---------------------------------------------------------------------------
# Full module forward (eval mode).
# ---------------------------------------------------------------------------
def causal_self_attention(x, params, *, num_heads, block_q=256, block_k=256,
                          compute_dtype=jnp.bfloat16):
    """x: (B, T, C).  params: wqkv_t (C, 3C), bqkv (1, 3C), wo_t (C, C), bo (1, C)."""
    B, T, C = x.shape
    H = num_heads
    hd = C // H
    bq = min(block_q, T)
    bk = min(block_k, T)

    # 1) Fused QKV projection: one MXU stream, one weight DMA, N = 3C.
    qkv = _linear(x.reshape(B * T, C), params["wqkv_t"], params["bqkv"])   # (B*T, 3C)

    # 2) No HBM transposes: a free reshape exposes (B, T, 3, H, hd); the attention
    #    BlockSpecs slice q / k / v windows straight out of it.
    qkv = qkv.reshape(B, T, 3, H, hd)

    # 3) Flash-style causal attention; output comes back token-major (B, T, C), so the
    #    output projection consumes it with another free reshape (no transpose pass).
    att = _flash_attention(qkv, num_heads=H, sm_scale=1.0 / math.sqrt(hd),
                           block_q=bq, block_k=bk, compute_dtype=compute_dtype)

    # 4) Output projection.  (attn/resid dropout are identity in eval mode.)
    out = _linear(att.reshape(B * T, C), params["wo_t"], params["bo"])
    return out.reshape(B, T, C)


# ---------------------------------------------------------------------------
# Demo / self-check.
# ---------------------------------------------------------------------------
def _init_linear(key, fan_in, fan_out):
    """PyTorch-Linear-style init: U(-1/sqrt(fan_in), 1/sqrt(fan_in))."""
    kw, kb = jax.random.split(key)
    bound = 1.0 / math.sqrt(fan_in)
    w = jax.random.uniform(kw, (fan_out, fan_in), jnp.float32, -bound, bound)
    b = jax.random.uniform(kb, (fan_out,), jnp.float32, -bound, bound)
    return w, b


def _reference(x, wq_t, bq, wk_t, bk, wv_t, bv, wo_t, bo, num_heads):
    """Pure-JAX reference mirroring the PyTorch forward (eval mode)."""
    B, T, C = x.shape
    hd = C // num_heads
    q = x @ wq_t + bq
    k = x @ wk_t + bk
    v = x @ wv_t + bv
    q = q.reshape(B, T, num_heads, hd).transpose(0, 2, 1, 3)
    k = k.reshape(B, T, num_heads, hd).transpose(0, 2, 1, 3)
    v = v.reshape(B, T, num_heads, hd).transpose(0, 2, 1, 3)
    scores = jnp.einsum("bhtd,bhsd->bhts", q, k) / math.sqrt(hd)
    mask = jnp.tril(jnp.ones((T, T), bool))
    scores = jnp.where(mask[None, None], scores, -jnp.inf)
    w = jax.nn.softmax(scores, axis=-1)
    att = jnp.einsum("bhts,bhsd->bhtd", w, v)
    att = att.transpose(0, 2, 1, 3).reshape(B, T, C)
    return att @ wo_t + bo


if __name__ == "__main__":
    # Small config consistent with the module: n_embd=32, n_head=4, block_size >= T.
    B, T, C, NH = 2, 16, 32, 4
    BLOCK = 8   # tiny flash tiles so the demo exercises 2x2 q/kv tiling + causal skip

    key = jax.random.PRNGKey(0)
    kx, kqk, kkk, kvk, kok = jax.random.split(key, 5)
    x = jax.random.normal(kx, (B, T, C), jnp.float32)

    wq, bq = _init_linear(kqk, C, C)
    wk, bk = _init_linear(kkk, C, C)
    wv, bv = _init_linear(kvk, C, C)
    wo, bo = _init_linear(kok, C, C)

    def make_params(wdtype):
        # Packed, pre-transposed parameters; fused QKV weight is (C, 3C).
        wqkv_t = jnp.concatenate([wq.T, wk.T, wv.T], axis=1).astype(wdtype)
        bqkv = jnp.concatenate([bq, bk, bv]).reshape(1, 3 * C).astype(jnp.float32)
        return {
            "wqkv_t": wqkv_t,
            "bqkv": bqkv,
            "wo_t": wo.T.astype(wdtype),
            "bo": bo.reshape(1, C).astype(jnp.float32),
        }

    ref = _reference(x, wq.T, bq, wk.T, bk, wv.T, bv, wo.T, bo, NH)

    # 1) Exact f32 math, tiny flash tiles: exercises multi-tile causal skipping,
    #    clamped k/v DMA, and the online softmax, with a tight tolerance.
    out_f32 = causal_self_attention(x, make_params(jnp.float32), num_heads=NH,
                                    block_q=BLOCK, block_k=BLOCK,
                                    compute_dtype=jnp.float32)
    out_f32 = jax.block_until_ready(out_f32)
    assert out_f32.shape == (B, T, C)
    assert jnp.allclose(out_f32, ref, rtol=5e-3, atol=5e-3), "f32 kernel mismatch vs reference"

    # 2) Default perf path on f32 activations: bf16 MXU operands in attention,
    #    f32 softmax state / accumulation, default (clamped) tiles.
    out_mix = causal_self_attention(x, make_params(jnp.float32), num_heads=NH)
    out_mix = jax.block_until_ready(out_mix)
    assert jnp.allclose(out_mix, ref, rtol=3e-2, atol=3e-2), "mixed-precision kernel mismatch"

    # 3) bf16 activations + bf16 weights: halves weight/activation HBM traffic and
    #    feeds the bf16 MXU end to end; softmax / accumulation remain f32 in-kernel.
    out_bf16 = causal_self_attention(x.astype(jnp.bfloat16), make_params(jnp.bfloat16),
                                     num_heads=NH)
    out_bf16 = jax.block_until_ready(out_bf16).astype(jnp.float32)
    assert jnp.allclose(out_bf16, ref, rtol=8e-2, atol=8e-2), "bf16 kernel mismatch vs reference"

    print("KERNEL_OK")
</pallas_src>

<mosaic_0001>
module attributes {stable_mosaic.version = 11 : i64} {
  func.func @_linear_kernel(%arg0: i32, %arg1: i32, %arg2: i32, %arg3: memref<32x32xf32, #tpu.memory_space<vmem>>, %arg4: memref<32x96xf32, #tpu.memory_space<vmem>>, %arg5: memref<1x96xf32, #tpu.memory_space<vmem>>, %arg6: memref<32x96xf32, #tpu.memory_space<vmem>>, %arg7: memref<32x96xf32, #tpu.memory_space<vmem>>) attributes {dimension_semantics = [#tpu.dimension_semantics<parallel>, #tpu.dimension_semantics<parallel>, #tpu.dimension_semantics<arbitrary>], iteration_bounds = array<i64: 1, 1, 1>, scalar_prefetch = 0 : i64, scratch_operands = 1 : i64, tpu.core_type = #tpu.core_type<tc>, window_params = [{transform_indices = @transform_0, window_bounds = array<i64: 32, 32>}, {transform_indices = @transform_1, window_bounds = array<i64: 32, 96>}, {transform_indices = @transform_2, window_bounds = array<i64: 1, 96>}, {transform_indices = @transform_3, window_bounds = array<i64: 32, 96>}]} {
    %c0_i32 = arith.constant 0 : i32
    %0 = arith.cmpi eq, %arg2, %c0_i32 : i32
    %1 = arith.extui %0 : i1 to i32
    %c0_i32_0 = arith.constant 0 : i32
    %2 = arith.cmpi ne, %1, %c0_i32_0 : i32
    scf.if %2 {
      %cst_10 = arith.constant 0.000000e+00 : f32
      %12 = vector.broadcast %cst_10 : f32 to vector<32x96xf32>
      %c0_11 = arith.constant 0 : index
      %c0_12 = arith.constant 0 : index
      %13 = vector.load %arg7[%c0_11, %c0_12] : memref<32x96xf32, #tpu.memory_space<vmem>>, vector<32x96xf32>
      tpu.vector_store %arg7[%c0_11, %c0_12], %12 {strides = array<i32>} : memref<32x96xf32, #tpu.memory_space<vmem>>, vector<32x96xf32>,
    } else {
    }
    %c0 = arith.constant 0 : index
    %c0_1 = arith.constant 0 : index
    %3 = vector.load %arg7[%c0, %c0_1] : memref<32x96xf32, #tpu.memory_space<vmem>>, vector<32x96xf32>
    %c0_2 = arith.constant 0 : index
    %c0_3 = arith.constant 0 : index
    %4 = vector.load %arg3[%c0_2, %c0_3] : memref<32x32xf32, #tpu.memory_space<vmem>>, vector<32x32xf32>
    %c0_4 = arith.constant 0 : index
    %c0_5 = arith.constant 0 : index
    %5 = vector.load %arg4[%c0_4, %c0_5] : memref<32x96xf32, #tpu.memory_space<vmem>>, vector<32x96xf32>
    %cst = arith.constant dense<0.000000e+00> : vector<32x96xf32>
    %6 = tpu.matmul %4, %5, %cst {dimension_numbers = #tpu.dot_dimension_numbers<[1], [0], [0], [1], [0, 0, 1, 1], [], []>} : vector<32x32xf32>, vector<32x96xf32>, vector<32x96xf32> -> vector<32x96xf32>
    %7 = arith.addf %3, %6 : vector<32x96xf32>
    %c0_6 = arith.constant 0 : index
    %c0_7 = arith.constant 0 : index
    %8 = vector.load %arg7[%c0_6, %c0_7] : memref<32x96xf32, #tpu.memory_space<vmem>>, vector<32x96xf32>
    tpu.vector_store %arg7[%c0_6, %c0_7], %7 {strides = array<i32>} : memref<32x96xf32, #tpu.memory_space<vmem>>, vector<32x96xf32>,
    %c0_i32_8 = arith.constant 0 : i32
    %9 = arith.cmpi eq, %arg2, %c0_i32_8 : i32
    %10 = arith.extui %9 : i1 to i32
    %c0_i32_9 = arith.constant 0 : i32
    %11 = arith.cmpi ne, %10, %c0_i32_9 : i32
    scf.if %11 {
      %c0_10 = arith.constant 0 : index
      %c0_11 = arith.constant 0 : index
      %12 = vector.load %arg7[%c0_10, %c0_11] : memref<32x96xf32, #tpu.memory_space<vmem>>, vector<32x96xf32>
      %c0_12 = arith.constant 0 : index
      %c0_13 = arith.constant 0 : index
      %13 = vector.load %arg5[%c0_12, %c0_13] : memref<1x96xf32, #tpu.memory_space<vmem>>, vector<1x96xf32>
      %14 = vector.broadcast %13 : vector<1x96xf32> to vector<32x96xf32>
      %15 = arith.addf %12, %14 : vector<32x96xf32>
      %c0_14 = arith.constant 0 : index
      %c0_15 = arith.constant 0 : index
      %16 = vector.load %arg6[%c0_14, %c0_15] : memref<32x96xf32, #tpu.memory_space<vmem>>, vector<32x96xf32>
      tpu.vector_store %arg6[%c0_14, %c0_15], %15 {strides = array<i32>} : memref<32x96xf32, #tpu.memory_space<vmem>>, vector<32x96xf32>,
    } else {
    }
    return
  }
  func.func @transform_0(%arg0: i32, %arg1: i32, %arg2: i32) -> (i32, i32) {
    %c0_i32 = arith.constant 0 : i32
    return %arg1, %arg2 : i32, i32
  }
  func.func @transform_1(%arg0: i32, %arg1: i32, %arg2: i32) -> (i32, i32) {
    %c0_i32 = arith.constant 0 : i32
    return %arg2, %arg0 : i32, i32
  }
  func.func @transform_2(%arg0: i32, %arg1: i32, %arg2: i32) -> (i32, i32) {
    %c0_i32 = arith.constant 0 : i32
    %c0_i32_0 = arith.constant 0 : i32
    return %c0_i32, %arg0 : i32, i32
  }
  func.func @transform_3(%arg0: i32, %arg1: i32, %arg2: i32) -> (i32, i32) {
    %c0_i32 = arith.constant 0 : i32
    return %arg1, %arg0 : i32, i32
  }
}

</mosaic_0001>

<llo_original>
// kernel: tpu_custom_call.1
$region0: #{tpu_custom_call.1}
  #allocation0 [shape = 'u32[]', space=smem, size = 0x4, offset = 0x4, fixed_abs, tag = 'smem constant byte address 0x4 - core index']
  #allocation1 [shape = 'u32[144,128]{1,0:T(1,128)}', space=vmem, size = 0x12000, scoped, tag = 'internal scratch']
  #allocation2 [shape = 'f32[32,96]{1,0:T(8,128)}', space=vmem, size = 0x4000, scoped, tag = 'scratch operand']
  %s0 = inlined_call_operand.hbm [shape: f32[32,32], index: 0, kind: input, shape index: {}]
  %s1 = inlined_call_operand.hbm [shape: f32[32,96], index: 1, kind: input, shape index: {}]
  %s2 = inlined_call_operand.vmem [shape: f32[1,96], index: 2, kind: input, shape index: {}]
  %s3 = inlined_call_operand.hbm [shape: f32[32,96], index: 3, kind: output, shape index: {}]
  %s4 = sld [smem:[#allocation0]]
  $region38: #{tpu_custom_call.1} parent=0
    _
  %s6 = ssub.s32 1, %s4
  %s7 = scalar_select 0, %s6, %s4
  $region1: #{tpu_custom_call.1} parent=0
    #allocation3 [shape = 'u8[16384]{0}', space=vmem, size = 0x4000, scoped, tag = 'input window, operand 0, single buffered']
    #allocation4 [shape = 's32[1]{0}', space=sflag, size = 0x4, scoped, tag = 'scoped memory for tpu_custom_call.1']
    #allocation5 [shape = 's32[1]{0}', space=sflag, size = 0x4, scoped, tag = 'scoped memory for tpu_custom_call.1']
    #allocation6 [shape = 'u8[16384]{0}', space=vmem, size = 0x4000, scoped, tag = 'input window, operand 1, single buffered']
    #allocation7 [shape = 's32[1]{0}', space=sflag, size = 0x4, scoped, tag = 'scoped memory for tpu_custom_call.1']
    #allocation8 [shape = 'u8[16384]{0}', space=vmem, size = 0x4000, scoped, tag = 'output window, operand 0, single buffered']
    %8 = vsyncpa [#allocation4], 0
    %9 = vsyncpa [#allocation7], 0
    %10 = vsyncpa [#allocation5], 0
    // Predicated region
    $region2: #{tpu_custom_call.1} parent=1 // pred_check
      _
    $region3: #{tpu_custom_call.1} parent=1 // pred_check_branch
      %12 = sbr.rel (0) target = $region5
    $region4: #{tpu_custom_call.1} parent=1 // pred_region
      %s14 = ssub.s32 512, 512
      %15 = vsyncadd [#allocation4], %s14
      %s16 = sshll.u32 [#allocation3], 4
      %s17 = int_to_ptr.vmem [resolvable:$true] %s16
      %22 = dma.hbm_to_vmem [thread:$0]  %s0, 512, %s17, [#allocation4], 128, 128, 8
    $region5: #{tpu_custom_call.1} parent=1 // pred_fallthru
      _
    // Predicated region
    $region6: #{tpu_custom_call.1} parent=1 // pred_check
      _
    $region7: #{tpu_custom_call.1} parent=1 // pred_check_branch
      %24 = sbr.rel (0) target = $region9
    $region8: #{tpu_custom_call.1} parent=1 // pred_region
      %s26 = ssub.s32 512, 512
      %27 = vsyncadd [#allocation7], %s26
      %s28 = sshll.u32 [#allocation6], 4
      %s29 = int_to_ptr.vmem [resolvable:$true] %s28
      %34 = dma.hbm_to_vmem [thread:$0]  %s1, 512, %s29, [#allocation7], 128, 128, 8
    $region9: #{tpu_custom_call.1} parent=1 // pred_fallthru
      _
    // Predicated region
    $region10: #{tpu_custom_call.1} parent=1 // pred_check
      _
    $region11: #{tpu_custom_call.1} parent=1 // pred_check_branch
      %36 = sbr.rel (0) target = $region13
    $region12: #{tpu_custom_call.1} parent=1 // pred_region
      _
    $region13: #{tpu_custom_call.1} parent=1 // pred_fallthru
      _
    // Predicated region
    $region14: #{tpu_custom_call.1} parent=1 // pred_check
      _
    $region15: #{tpu_custom_call.1} parent=1 // pred_check_branch
      %38 = sbr.rel (0) target = $region17
    $region16: #{tpu_custom_call.1} parent=1 // pred_region
      %39 = dma.done [#allocation4], 512
    $region17: #{tpu_custom_call.1} parent=1 // pred_fallthru
      _
    // Predicated region
    $region18: #{tpu_custom_call.1} parent=1 // pred_check
      _
    $region19: #{tpu_custom_call.1} parent=1 // pred_check_branch
      %41 = sbr.rel (0) target = $region21
    $region20: #{tpu_custom_call.1} parent=1 // pred_region
      %42 = dma.done [#allocation7], 512
    $region21: #{tpu_custom_call.1} parent=1 // pred_fallthru
      _
    %p43 = scmp.eq.s32.totalorder 0, 0
    // Predicated region
    $region22: #{tpu_custom_call.1} parent=1 // pred_check
      %p44 = pneg %p43
    $region23: #{tpu_custom_call.1} parent=1 // pred_check_branch
      %46 = sbr.rel (%p44) target = $region25
    $region24: #{tpu_custom_call.1} parent=1 // pred_region
      %vm47 = vcmask 785408
      %48 = vst.msk [vmem:[#allocation2] sm:$0xff] %vm47, 0.0
      %49 = vst.msk [vmem:[#allocation2 + $0x8] sm:$0xff] %vm47, 0.0
      %50 = vst.msk [vmem:[#allocation2 + $0x10] sm:$0xff] %vm47, 0.0
      %51 = vst.msk [vmem:[#allocation2 + $0x18] sm:$0xff] %vm47, 0.0
    $region25: #{tpu_custom_call.1} parent=1 // pred_fallthru
      _
    %v52 = vld [vmem:[#allocation2] sm:$0xff]
    %v53 = vld [vmem:[#allocation2 + $0x8] sm:$0xff]
    %v54 = vld [vmem:[#allocation2 + $0x10] sm:$0xff]
    %v55 = vld [vmem:[#allocation2 + $0x18] sm:$0xff]
    %v56 = vld [vmem:[#allocation3] sm:$0xff]
    %v57 = vld [vmem:[#allocation3 + $0x8] sm:$0xff]
    %v58 = vld [vmem:[#allocation3 + $0x10] sm:$0xff]
    %v59 = vld [vmem:[#allocation3 + $0x18] sm:$0xff]
    %v60 = vld [vmem:[#allocation6] sm:$0xff]
    %v61 = vld [vmem:[#allocation6 + $0x8] sm:$0xff]
    %v62 = vld [vmem:[#allocation6 + $0x10] sm:$0xff]
    %v63 = vld [vmem:[#allocation6 + $0x18] sm:$0xff]
    %vm64 = vcmask 261120
    %v66 = vsel %vm64, %v56, 0
    %v69 = vsel %vm64, %v57, 0
    %v72 = vsel %vm64, %v58, 0
    %v75 = vsel %vm64, %v59, 0
    %77 = vmatprep.subr.mxu0 0.0
    %78 = vmatpush1.msra.mxu0 %v60
    %79 = vmatprep.subr.mxu0 0.0
    %80 = vmatpush1.msra.mxu0 %v61
    %81 = vmatprep.subr.mxu0 0.0
    %82 = vmatpush1.msra.mxu0 %v62
    %83 = vmatprep.subr.mxu0 0.0
    %84 = vmatpush1.msra.mxu0 %v63
    %85 = vmatprep.subr.mxu0 0.0
    %86 = vmatpush1.msra.mxu0 0.0
    %87 = vmatprep.subr.mxu0 0.0
    %88 = vmatpush1.msra.mxu0 0.0
    %89 = vmatprep.subr.mxu0 0.0
    %90 = vmatpush1.msra.mxu0 0.0
    %91 = vmatprep.subr.mxu0 0.0
    %92 = vmatpush1.msra.mxu0 0.0
    %93 = vmatprep.subr.mxu0 0.0
    %94 = vmatpush1.msra.mxu0 0.0
    %95 = vmatprep.subr.mxu0 0.0
    %96 = vmatpush1.msra.mxu0 0.0
    %97 = vmatprep.subr.mxu0 0.0
    %98 = vmatpush1.msra.mxu0 0.0
    %99 = vmatprep.subr.mxu0 0.0
    %100 = vmatpush1.msra.mxu0 0.0
    %101 = vmatprep.subr.mxu0 0.0
    %102 = vmatpush1.msra.mxu0 0.0
    %103 = vmatprep.subr.mxu0 0.0
    %104 = vmatpush1.msra.mxu0 0.0
    %105 = vmatprep.subr.mxu0 0.0
    %106 = vmatpush1.msra.mxu0 0.0
    %107 = vmatprep.subr.mxu0 0.0
    %108 = vmatpush1.msra.mxu0 0.0
    %109 = vmatprep.subr.mxu0 0.0
    %110 = vmatpush1.msra.mxu0 0.0
    %111 = vmatprep.subr.mxu0 0.0
    %112 = vmatpush1.msra.mxu0 0.0
    %113 = vmatprep.subr.mxu0 0.0
    %114 = vmatpush1.msra.mxu0 0.0
    %115 = vmatprep.subr.mxu0 0.0
    %116 = vmatpush1.msra.mxu0 0.0
    %117 = vmatprep.subr.mxu0 0.0
    %118 = vmatpush1.msra.mxu0 0.0
    %119 = vmatprep.subr.mxu0 0.0
    %120 = vmatpush1.msra.mxu0 0.0
    %121 = vmatprep.subr.mxu0 0.0
    %122 = vmatpush1.msra.mxu0 0.0
    %123 = vmatprep.subr.mxu0 0.0
    %124 = vmatpush1.msra.mxu0 0.0
    %125 = vmatprep.subr.mxu0 0.0
    %126 = vmatpush1.msra.mxu0 0.0
    %127 = vmatprep.subr.mxu0 0.0
    %128 = vmatpush1.msra.mxu0 0.0
    %129 = vmatprep.subr.mxu0 0.0
    %130 = vmatpush1.msra.mxu0 0.0
    %131 = vmatprep.subr.mxu0 0.0
    %132 = vmatpush1.msra.mxu0 0.0
    %133 = vmatprep.subr.mxu0 0.0
    %134 = vmatpush1.msra.mxu0 0.0
    %135 = vmatprep.subr.mxu0 0.0
    %136 = vmatpush1.msra.mxu0 0.0
    %137 = vmatprep.subr.mxu0 0.0
    %138 = vmatpush1.msra.mxu0 0.0
    %139 = vmatprep.subr.mxu0 0.0
    %140 = vmatpush1.msra.mxu0 0.0
    %141 = vmatprep.mubr.f32.mxu0 0.0
    %142 = vmatmul.mubr.f32.gmra.mrb[0].mxu0 %v66
    %v143 = vpop.f32.mrb[0].mxu0
    %v144 = vadd.f32 0.0, %v143
    %v145 = vpop.f32.mrb[0].mxu0
    %146 = vmatprep.mubr.f32.mxu0 0.0
    %147 = vmatmul.mubr.f32.gmra.mrb[0].mxu0 %v69
    %v148 = vpop.f32.mrb[0].mxu0
    %v149 = vadd.f32 0.0, %v148
    %v150 = vpop.f32.mrb[0].mxu0
    %151 = vmatprep.mubr.f32.mxu0 0.0
    %152 = vmatmul.mubr.f32.gmra.mrb[0].mxu0 %v72
    %v153 = vpop.f32.mrb[0].mxu0
    %v154 = vadd.f32 0.0, %v153
    %v155 = vpop.f32.mrb[0].mxu0
    %156 = vmatprep.mubr.f32.mxu0 0.0
    %157 = vmatmul.mubr.f32.gmra.mrb[0].mxu0 %v75
    %v158 = vpop.f32.mrb[0].mxu0
    %v159 = vadd.f32 0.0, %v158
    %v160 = vpop.f32.mrb[0].mxu0
    %161 = vdwg.mxu0
    %v162 = vadd.f32 %v52, %v144
    %v163 = vadd.f32 %v53, %v149
    %v164 = vadd.f32 %v54, %v154
    %v165 = vadd.f32 %v55, %v159
    %vm166 = vcmask 785408
    %167 = vst.msk [vmem:[#allocation2] sm:$0xff] %vm166, %v162
    %168 = vst.msk [vmem:[#allocation2 + $0x8] sm:$0xff] %vm166, %v163
    %169 = vst.msk [vmem:[#allocation2 + $0x10] sm:$0xff] %vm166, %v164
    %170 = vst.msk [vmem:[#allocation2 + $0x18] sm:$0xff] %vm166, %v165
    // Predicated region
    $region26: #{tpu_custom_call.1} parent=1 // pred_check
      %p171 = pneg %p43
    $region27: #{tpu_custom_call.1} parent=1 // pred_check_branch
      %173 = sbr.rel (%p171) target = $region29
    $region28: #{tpu_custom_call.1} parent=1 // pred_region
      %v174 = vld [vmem:[#allocation2] sm:$0xff]
      %v175 = vld [vmem:[#allocation2 + $0x8] sm:$0xff]
      %v176 = vld [vmem:[#allocation2 + $0x10] sm:$0xff]
      %v177 = vld [vmem:[#allocation2 + $0x18] sm:$0xff]
      %v178 = vld [vmem:[%s2] sm:$0x1]
      %v180 = vlaneseq
      %v181 = vshrl.u32 %v180, 7
      %v182 = vsub.s32 0, %v181
      %v183 = vrot.slane %v178, %v182
      %v185 = vadd.f32 %v174, %v183
      %v186 = vadd.f32 %v175, %v183
      %v187 = vadd.f32 %v176, %v183
      %v188 = vadd.f32 %v177, %v183
      %189 = vst.msk [vmem:[#allocation8] sm:$0xff] %vm166, %v185
      %190 = vst.msk [vmem:[#allocation8 + $0x8] sm:$0xff] %vm166, %v186
      %191 = vst.msk [vmem:[#allocation8 + $0x10] sm:$0xff] %vm166, %v187
      %192 = vst.msk [vmem:[#allocation8 + $0x18] sm:$0xff] %vm166, %v188
    $region29: #{tpu_custom_call.1} parent=1 // pred_fallthru
      _
    // Predicated region
    $region30: #{tpu_custom_call.1} parent=1 // pred_check
      _
    $region31: #{tpu_custom_call.1} parent=1 // pred_check_branch
      %194 = sbr.rel (0) target = $region33
    $region32: #{tpu_custom_call.1} parent=1 // pred_region
      %s196 = ssub.s32 512, 512
      %197 = vsyncadd [#allocation5], %s196
      %s198 = sshll.u32 [#allocation8], 4
      %s199 = int_to_ptr.vmem [resolvable:$true] %s198
      %204 = dma.vmem_to_hbm [thread:$0]  %s199, 512, %s3, [#allocation5], 128, 128, 8
    $region33: #{tpu_custom_call.1} parent=1 // pred_fallthru
      _
    // Predicated region
    $region34: #{tpu_custom_call.1} parent=1 // pred_check
      _
    $region35: #{tpu_custom_call.1} parent=1 // pred_check_branch
      %206 = sbr.rel (0) target = $region37
    $region36: #{tpu_custom_call.1} parent=1 // pred_region
      %207 = dma.done [#allocation5], 512
    $region37: #{tpu_custom_call.1} parent=1 // pred_fallthru
      _
    %208 = vsyncpa [#allocation4], 1
    %209 = vsyncpa [#allocation7], 1
    %210 = vsyncpa [#allocation5], 1

</llo_original>
